<compile_context>
chip_gen: v7x
topology: tpu7x:2x2x1
jax: 0.10.0
libtpu: 0.0.40
codegen_flags: <defaults>
</compile_context>

<pallas_src>
import functools
import math

import jax
import jax.numpy as jnp
from jax import lax
from jax.experimental import pallas as pl
from jax.experimental.pallas import tpu as pltpu

MAX_LEN = 256


def make_pe(d_model: int, max_len: int = MAX_LEN, dtype=jnp.float32):
  """Sinusoidal positional-encoding buffer, shape (1, max_len, d_model).

  Matches the PyTorch module: first half sin, second half cos,
  scale_factor = -log(10000) / (d_model//2 - 1).
  """
  half = d_model // 2
  position = jnp.arange(max_len, dtype=jnp.float32)[:, None]            # (max_len, 1)
  scale_factor = -math.log(10000.0) / (half - 1)
  div_term = jnp.exp(jnp.arange(half, dtype=jnp.float32) * scale_factor)  # (half,)
  pe = jnp.zeros((1, max_len, d_model), dtype=dtype)
  pe = pe.at[0, :, :half].set(jnp.sin(position * div_term).astype(dtype))
  pe = pe.at[0, :, half:2 * half].set(jnp.cos(position * div_term).astype(dtype))
  return pe


# ----------------------------- kernels ------------------------------------ #

def _add_pe_flat_kernel(x_ref, pe_ref, o_ref):
  # x_ref: (Bt, S*D), pe_ref: (1, S*D) VMEM-resident -> broadcast add
  o_ref[...] = x_ref[...] + pe_ref[...].astype(x_ref.dtype)


def _add_pe_dropout_flat_kernel(x_ref, pe_ref, bits_ref, o_ref, *,
                                threshold, inv_keep):
  y = x_ref[...] + pe_ref[...].astype(x_ref.dtype)
  keep = bits_ref[...] >= jnp.uint32(threshold)          # P(keep) = 1 - rate
  o_ref[...] = jnp.where(keep, y * jnp.asarray(inv_keep, dtype=y.dtype),
                         jnp.zeros_like(y))


def _gather_pe_rows(pos_ref, pe_ref, out_dtype):
  """Gather pe rows for a (Bt, S) block of positions via one-hot matmul."""
  pos = pos_ref[...]                                     # (Bt, S) int32
  bt, s = pos.shape
  m, d = pe_ref.shape
  pos_col = pos.reshape(bt * s, 1)
  onehot = (pos_col == lax.broadcasted_iota(jnp.int32, (bt * s, m), 1)
            ).astype(jnp.float32)                        # (Bt*S, MAX_LEN)
  rows = jnp.dot(onehot, pe_ref[...].astype(jnp.float32),
                 preferred_element_type=jnp.float32)     # (Bt*S, D)
  return rows.reshape(bt, s, d).astype(out_dtype)


def _add_pe_gather_kernel(pos_ref, x_ref, pe_ref, o_ref):
  o_ref[...] = x_ref[...] + _gather_pe_rows(pos_ref, pe_ref, x_ref.dtype)


def _add_pe_gather_dropout_kernel(pos_ref, x_ref, pe_ref, bits_ref, o_ref, *,
                                  threshold, inv_keep):
  y = x_ref[...] + _gather_pe_rows(pos_ref, pe_ref, x_ref.dtype)
  keep = bits_ref[...] >= jnp.uint32(threshold)
  o_ref[...] = jnp.where(keep, y * jnp.asarray(inv_keep, dtype=y.dtype),
                         jnp.zeros_like(y))


# ----------------------------- wrapper ------------------------------------ #

def _pick_batch_tile(batch, row_bytes, target_bytes=2 * 1024 * 1024):
  """Largest divisor of `batch` whose block stays around `target_bytes`."""
  bt = max(1, min(batch, target_bytes // max(row_bytes, 1)))
  candidates = [d for d in range(int(bt), 0, -1) if batch % d == 0]
  for d in candidates:                     # prefer sublane-friendly tiles
    if d == batch or d % 8 == 0:
      return d
  return candidates[0]


def positional_encoding_forward(x, pe, inputs_positions=None,
                                dropout_rate: float = 0.1,
                                train: bool = False, seed: int = 0):
  """Pallas-backed equivalent of PositionalEncoding.forward (non-decode path).

  x: (B, S, D). Returns (B, S, D).
  """
  # TODO(synk): decode=True / cache path is host-side scalar bookkeeping
  # (single pe-row lookup + counter increment); not a kernel-worthy hot path.
  B, S, D = x.shape
  itemsize = jnp.dtype(x.dtype).itemsize
  use_dropout = bool(train) and float(dropout_rate) > 0.0
  if use_dropout:
    rate = float(dropout_rate)
    threshold = min(int(round(rate * float(2 ** 32))), 2 ** 32 - 1)
    inv_keep = 1.0 / (1.0 - rate)
    # TODO(synk): pltpu.prng_seed/prng_random_bits would avoid this extra HBM
    # stream on real TPU, but have no interpret/CPU lowering; generate bits here.
    bits = jax.random.bits(jax.random.PRNGKey(seed), (B, S, D), dtype=jnp.uint32)

  cparams = pltpu.CompilerParams(dimension_semantics=("parallel",))

  if inputs_positions is None:
    # ---- flattened, lane-dense path: x (B, S*D) + pe (1, S*D) broadcast ----
    N = S * D
    x2 = x.reshape(B, N)
    pe_flat = pe[0, :S, :].reshape(1, N).astype(x.dtype)
    bt = _pick_batch_tile(B, N * itemsize)
    grid = (B // bt,)
    row_spec = pl.BlockSpec((bt, N), lambda i: (i, 0))
    pe_spec = pl.BlockSpec((1, N), lambda i: (0, 0))       # VMEM-resident
    out_shape = jax.ShapeDtypeStruct((B, N), x.dtype)
    bytes_accessed = (2 * B * N + N) * itemsize + (4 * B * N if use_dropout else 0)
    cost = pl.CostEstimate(flops=int(2 * B * N), transcendentals=0,
                           bytes_accessed=int(bytes_accessed))

    if not use_dropout:
      y = pl.pallas_call(
          _add_pe_flat_kernel,
          grid=grid,
          in_specs=[row_spec, pe_spec],
          out_specs=row_spec,
          out_shape=out_shape,
          compiler_params=cparams,
          cost_estimate=cost,
      )(x2, pe_flat)
    else:
      kernel = functools.partial(_add_pe_dropout_flat_kernel,
                                 threshold=threshold, inv_keep=inv_keep)
      y = pl.pallas_call(
          kernel,
          grid=grid,
          in_specs=[row_spec, pe_spec, row_spec],
          out_specs=row_spec,
          out_shape=out_shape,
          compiler_params=cparams,
          cost_estimate=cost,
      )(x2, pe_flat, bits.reshape(B, N))
    return y.reshape(B, S, D)

  # ---- gathered-positions path: full pe table resident in VMEM ----
  positions = inputs_positions.astype(jnp.int32)           # (B, S)
  pe_tab = pe[0].astype(jnp.float32)                        # (MAX_LEN, D)
  max_len = pe_tab.shape[0]
  bt = _pick_batch_tile(B, S * D * itemsize)
  grid = (B // bt,)
  pos_spec = pl.BlockSpec((bt, S), lambda i: (i, 0))
  x_spec = pl.BlockSpec((bt, S, D), lambda i: (i, 0, 0))
  pe_spec = pl.BlockSpec((max_len, D), lambda i: (0, 0))    # VMEM-resident
  out_shape = jax.ShapeDtypeStruct((B, S, D), x.dtype)
  bytes_accessed = ((2 * B * S * D + max_len * D) * itemsize + B * S * 4
                    + (4 * B * S * D if use_dropout else 0))
  cost = pl.CostEstimate(flops=int(2 * B * S * max_len * D), transcendentals=0,
                         bytes_accessed=int(bytes_accessed))

  if not use_dropout:
    return pl.pallas_call(
        _add_pe_gather_kernel,
        grid=grid,
        in_specs=[pos_spec, x_spec, pe_spec],
        out_specs=x_spec,
        out_shape=out_shape,
        compiler_params=cparams,
        cost_estimate=cost,
    )(positions, x, pe_tab)

  kernel = functools.partial(_add_pe_gather_dropout_kernel,
                             threshold=threshold, inv_keep=inv_keep)
  return pl.pallas_call(
      kernel,
      grid=grid,
      in_specs=[pos_spec, x_spec, pe_spec, x_spec],
      out_specs=x_spec,
      out_shape=out_shape,
      compiler_params=cparams,
      cost_estimate=cost,
  )(positions, x, pe_tab, bits)


# ------------------------------ main --------------------------------------- #

if __name__ == "__main__":
  B, S, D = 2, 8, 32
  key = jax.random.PRNGKey(0)
  kx, kp = jax.random.split(key)
  x = jax.random.normal(kx, (B, S, D), dtype=jnp.float32)
  positions = jax.random.randint(kp, (B, S), 0, MAX_LEN, dtype=jnp.int32)

  pe = make_pe(D, MAX_LEN)

  # 1) inputs_positions=None, eval-mode dropout (identity)
  y = jax.block_until_ready(
      positional_encoding_forward(x, pe, inputs_positions=None, train=False))
  y_ref = x + pe[:, :S, :]
  assert jnp.allclose(y, y_ref, atol=1e-5), "mismatch (positions=None, eval)"

  # 2) explicit inputs_positions, eval-mode dropout (identity)
  y2 = jax.block_until_ready(
      positional_encoding_forward(x, pe, inputs_positions=positions, train=False))
  y2_ref = x + jnp.take(pe[0], positions, axis=0)
  assert jnp.allclose(y2, y2_ref, atol=1e-5), "mismatch (gathered positions, eval)"

  # 3) train-mode dropout: every element is 0 or (x + pe) / keep_prob
  rate = 0.25
  inv = 1.0 / (1.0 - rate)
  y3 = jax.block_until_ready(
      positional_encoding_forward(x, pe, inputs_positions=None,
                                  dropout_rate=rate, train=True, seed=123))
  base3 = y_ref * inv
  ok3 = jnp.isclose(y3, 0.0, atol=1e-6) | jnp.isclose(y3, base3, atol=1e-5)
  assert bool(jnp.all(ok3)), "dropout output not in {0, (x+pe)/keep_prob}"
  kept = float(jnp.mean((jnp.abs(y3) > 0).astype(jnp.float32)))
  assert 0.5 < kept <= 1.0, "dropout keep fraction implausible"

  # 4) train-mode dropout with gathered positions
  y4 = jax.block_until_ready(
      positional_encoding_forward(x, pe, inputs_positions=positions,
                                  dropout_rate=rate, train=True, seed=7))
  base4 = y2_ref * inv
  ok4 = jnp.isclose(y4, 0.0, atol=1e-6) | jnp.isclose(y4, base4, atol=1e-5)
  assert bool(jnp.all(ok4)), "dropout+gather output mismatch"

  print("KERNEL_OK")
</pallas_src>

<mosaic_0001>
module attributes {stable_mosaic.version = 11 : i64} {
  func.func @_add_pe_flat_kernel(%arg0: i32, %arg1: memref<2x256xf32, #tpu.memory_space<vmem>>, %arg2: memref<1x256xf32, #tpu.memory_space<vmem>>, %arg3: memref<2x256xf32, #tpu.memory_space<vmem>>) attributes {dimension_semantics = [#tpu.dimension_semantics<parallel>], iteration_bounds = array<i64: 1>, scalar_prefetch = 0 : i64, scratch_operands = 0 : i64, tpu.core_type = #tpu.core_type<tc>, window_params = [{transform_indices = @transform_0, window_bounds = array<i64: 2, 256>}, {pipeline_mode = #tpu.pipeline_mode<synchronous>, transform_indices = @transform_1, window_bounds = array<i64: 1, 256>}, {transform_indices = @transform_2, window_bounds = array<i64: 2, 256>}]} {
    %c0 = arith.constant 0 : index
    %c0_0 = arith.constant 0 : index
    %0 = vector.load %arg1[%c0, %c0_0] : memref<2x256xf32, #tpu.memory_space<vmem>>, vector<2x256xf32>
    %c0_1 = arith.constant 0 : index
    %c0_2 = arith.constant 0 : index
    %1 = vector.load %arg2[%c0_1, %c0_2] : memref<1x256xf32, #tpu.memory_space<vmem>>, vector<1x256xf32>
    %2 = vector.broadcast %1 : vector<1x256xf32> to vector<2x256xf32>
    %3 = arith.addf %0, %2 : vector<2x256xf32>
    %c0_3 = arith.constant 0 : index
    %c0_4 = arith.constant 0 : index
    %4 = vector.load %arg3[%c0_3, %c0_4] : memref<2x256xf32, #tpu.memory_space<vmem>>, vector<2x256xf32>
    tpu.vector_store %arg3[%c0_3, %c0_4], %3 {strides = array<i32>} : memref<2x256xf32, #tpu.memory_space<vmem>>, vector<2x256xf32>,
    return
  }
  func.func @transform_0(%arg0: i32) -> (i32, i32) {
    %c0_i32 = arith.constant 0 : i32
    %c0_i32_0 = arith.constant 0 : i32
    return %arg0, %c0_i32 : i32, i32
  }
  func.func @transform_1(%arg0: i32) -> (i32, i32) {
    %c0_i32 = arith.constant 0 : i32
    %c0_i32_0 = arith.constant 0 : i32
    %c0_i32_1 = arith.constant 0 : i32
    return %c0_i32, %c0_i32_0 : i32, i32
  }
  func.func @transform_2(%arg0: i32) -> (i32, i32) {
    %c0_i32 = arith.constant 0 : i32
    %c0_i32_0 = arith.constant 0 : i32
    return %arg0, %c0_i32 : i32, i32
  }
}

</mosaic_0001>

<llo_original>
// kernel: tpu_custom_call.1
$region0: #{tpu_custom_call.1}
  #allocation0 [shape = 'u32[]', space=smem, size = 0x4, offset = 0x4, fixed_abs, tag = 'smem constant byte address 0x4 - core index']
  #allocation1 [shape = 'u32[144,128]{1,0:T(1,128)}', space=vmem, size = 0x12000, scoped, tag = 'internal scratch']
  %s0 = inlined_call_operand.hbm [shape: f32[2,256], index: 0, kind: input, shape index: {}]
  %s1 = inlined_call_operand.vmem [shape: f32[1,256], index: 1, kind: input, shape index: {}]
  %s2 = inlined_call_operand.hbm [shape: f32[2,256], index: 2, kind: output, shape index: {}]
  %s3 = sld [smem:[#allocation0]]
  $region22: #{tpu_custom_call.1} parent=0
    _
  %s5 = ssub.s32 1, %s3
  %s6 = scalar_select 0, %s5, %s3
  $region1: #{tpu_custom_call.1} parent=0
    #allocation2 [shape = 'u8[2048]{0}', space=vmem, size = 0x800, scoped, tag = 'input window, operand 0, single buffered']
    #allocation3 [shape = 's32[1]{0}', space=sflag, size = 0x4, scoped, tag = 'scoped memory for tpu_custom_call.1']
    #allocation4 [shape = 's32[1]{0}', space=sflag, size = 0x4, scoped, tag = 'scoped memory for tpu_custom_call.1']
    #allocation5 [shape = 'u8[2048]{0}', space=vmem, size = 0x800, scoped, tag = 'output window, operand 0, single buffered']
    %7 = vsyncpa [#allocation3], 0
    %8 = vsyncpa [#allocation4], 0
    // Predicated region
    $region2: #{tpu_custom_call.1} parent=1 // pred_check
      _
    $region3: #{tpu_custom_call.1} parent=1 // pred_check_branch
      %10 = sbr.rel (0) target = $region5
    $region4: #{tpu_custom_call.1} parent=1 // pred_region
      %s12 = ssub.s32 64, 64
      %13 = vsyncadd [#allocation3], %s12
      %s15 = sshll.u32 [#allocation2], 4
      %s16 = int_to_ptr.vmem [resolvable:$true] %s15
      %18 = dma.hbm_to_vmem [thread:$0]  %s0, 64, %s16, [#allocation3]
    $region5: #{tpu_custom_call.1} parent=1 // pred_fallthru
      _
    // Predicated region
    $region6: #{tpu_custom_call.1} parent=1 // pred_check
      _
    $region7: #{tpu_custom_call.1} parent=1 // pred_check_branch
      %20 = sbr.rel (0) target = $region9
    $region8: #{tpu_custom_call.1} parent=1 // pred_region
      _
    $region9: #{tpu_custom_call.1} parent=1 // pred_fallthru
      _
    // Predicated region
    $region10: #{tpu_custom_call.1} parent=1 // pred_check
      _
    $region11: #{tpu_custom_call.1} parent=1 // pred_check_branch
      %22 = sbr.rel (0) target = $region13
    $region12: #{tpu_custom_call.1} parent=1 // pred_region
      %23 = dma.done [#allocation3], 64
    $region13: #{tpu_custom_call.1} parent=1 // pred_fallthru
      _
    %v24 = vld [vmem:[#allocation2] sm:$0xf]
    %v25 = vld [vmem:[%s1] sm:$0x3]
    %v27 = vlaneseq
    %v28 = vshrl.u32 %v27, 7
    %v29 = vsub.s32 0, %v28
    %v30 = vrot.slane %v25, %v29
    %v31 = vlaneseq
    %v32 = vshrl.u32 %v31, 7
    %v33 = vsub.s32 1, %v32
    %v34 = vrot.slane %v25, %v33
    %v35 = vcombine.low %v30, %v34
    %v37 = vunpack.c.l.s4 1983009808
    %v38 = vunpack.c.0.s8 %v37
    %v39 = vlaneseq
    %v40 = vshrl.u32 %v39, 7
    %v41 = vsub.s32 %v38, %v40
    %v42 = vrot.slane %v35, %v41
    %v44 = vadd.f32 %v24, %v42
    %45 = vst [vmem:[#allocation5] sm:$0xf] %v44
    // Predicated region
    $region14: #{tpu_custom_call.1} parent=1 // pred_check
      _
    $region15: #{tpu_custom_call.1} parent=1 // pred_check_branch
      %47 = sbr.rel (0) target = $region17
    $region16: #{tpu_custom_call.1} parent=1 // pred_region
      %s49 = ssub.s32 64, 64
      %50 = vsyncadd [#allocation4], %s49
      %s52 = sshll.u32 [#allocation5], 4
      %s53 = int_to_ptr.vmem [resolvable:$true] %s52
      %55 = dma.vmem_to_hbm [thread:$0]  %s53, 64, %s2, [#allocation4]
    $region17: #{tpu_custom_call.1} parent=1 // pred_fallthru
      _
    // Predicated region
    $region18: #{tpu_custom_call.1} parent=1 // pred_check
      _
    $region19: #{tpu_custom_call.1} parent=1 // pred_check_branch
      %57 = sbr.rel (0) target = $region21
    $region20: #{tpu_custom_call.1} parent=1 // pred_region
      %58 = dma.done [#allocation4], 64
    $region21: #{tpu_custom_call.1} parent=1 // pred_fallthru
      _
    %59 = vsyncpa [#allocation3], 1
    %60 = vsyncpa [#allocation4], 1

</llo_original>
